<compile_context>
chip_gen: v7x
topology: tpu7x:2x2x1
jax: 0.10.0
libtpu: 0.0.40
codegen_flags: <defaults>
</compile_context>

<pallas_src>
import functools

import jax
import jax.numpy as jnp
from jax.experimental import pallas as pl
from jax.experimental.pallas import tpu as pltpu


def _tce_kernel(logits_ref, labels_ref, loss_ref, *, n):
    # logits_ref: [TB, C] native dtype; cast to f32 inside the kernel only.
    logits = logits_ref[...].astype(jnp.float32)            # [TB, C]
    labels = labels_ref[...]                                 # [TB, 1] int32

    # one-hot of the true class via lane iota (in-kernel "gather")
    col_ids = jax.lax.broadcasted_iota(jnp.int32, logits.shape, 1)   # [TB, C]
    one_hot = col_ids == labels                                      # [TB, C]

    # numerically stable logsumexp pieces
    m = jnp.max(logits, axis=-1, keepdims=True)              # [TB, 1]
    ex = jnp.exp(logits - m)                                  # [TB, C]
    denom = jnp.sum(ex, axis=-1, keepdims=True)               # [TB, 1]

    # true-class logit via masked sum (single [TB,C] select+reduce, exact)
    logit_y = jnp.sum(jnp.where(one_hot, logits, 0.0), axis=-1, keepdims=True)

    if n == 0:
        # standard cross entropy: logsumexp - logit_y
        loss = jnp.log(denom) + m - logit_y                   # [TB, 1]
    else:
        # p_y computed from [TB,1] vectors only — no full softmax materialized.
        p_y = jnp.exp(logit_y - m) * pl.reciprocal(denom, approx=True)
        x = 1.0 - p_y                                         # [TB, 1]
        loss = jnp.zeros_like(x)
        pt = jnp.ones_like(x)
        for i in range(1, n + 1):                             # n is static
            pt = pt * x
            loss = loss + pt * (1.0 / float(i))

    loss_ref[...] = loss


def _default_block_b(B, C, itemsize, vmem_limit_bytes):
    """Pick a batch tile: multiple of 8 rows, double-buffered logits tile well
    under the scoped VMEM limit, capped so big batches get many grid steps."""
    per_buffer_budget = vmem_limit_bytes // 8      # headroom for f32 copy + temps
    rows = per_buffer_budget // max(1, C * itemsize)
    rows = max(8, min(int(rows), 512))
    rows -= rows % 8                               # f32 sublane multiple
    b_ceil = ((B + 7) // 8) * 8
    return min(rows, b_ceil)


def tce_loss(logits, labels, n, reduction="mean", block_b=None,
             vmem_limit_bytes=64 * 1024 * 1024):
    """Pallas TCE loss. logits: [B, C] (any float dtype), labels: [B] int."""
    B, C = logits.shape
    labels2 = labels.reshape(B, 1).astype(jnp.int32)
    if block_b is None:
        block_b = _default_block_b(B, C, jnp.dtype(logits.dtype).itemsize,
                                   vmem_limit_bytes)
    grid = (pl.cdiv(B, block_b),)

    per_sample = pl.pallas_call(
        functools.partial(_tce_kernel, n=n),
        out_shape=jax.ShapeDtypeStruct((B, 1), jnp.float32),
        grid=grid,
        in_specs=[
            pl.BlockSpec((block_b, C), lambda i: (i, 0)),   # logits, native dtype
            pl.BlockSpec((block_b, 1), lambda i: (i, 0)),   # labels (tiny)
        ],
        out_specs=pl.BlockSpec((block_b, 1), lambda i: (i, 0)),
        compiler_params=pltpu.CompilerParams(
            dimension_semantics=("parallel",),
            vmem_limit_bytes=vmem_limit_bytes,
        ),
    )(logits, labels2)

    per_sample = per_sample.reshape(B)
    if reduction == "mean":
        return jnp.mean(per_sample)
    elif reduction == "none":
        return per_sample
    else:
        raise ValueError("reduction should be mean or none")


def _tce_ref(logits, labels, n, reduction="mean"):
    """Pure-JAX reference mirroring the PyTorch module (f32 math)."""
    logits = logits.astype(jnp.float32)
    if n == 0:
        logp = jax.nn.log_softmax(logits, axis=-1)
        loss = -jnp.take_along_axis(logp, labels[:, None], axis=1)[:, 0]
    else:
        prob = jax.nn.softmax(logits, axis=-1)
        p_y = jnp.take_along_axis(prob, labels[:, None], axis=1)[:, 0]
        x = 1.0 - p_y
        loss = jnp.zeros_like(x)
        pt = jnp.ones_like(x)
        for i in range(1, n + 1):
            pt = pt * x
            loss = loss + pt / i
    return jnp.mean(loss) if reduction == "mean" else loss


if __name__ == "__main__":
    key = jax.random.PRNGKey(0)
    k1, k2, k3, k4 = jax.random.split(key, 4)

    # --- Test 1: f32 logits, Taylor order 2, batch tiling (grid of 4 steps) ---
    B, C, n = 64, 128, 2
    logits = jax.random.normal(k1, (B, C), dtype=jnp.float32)
    labels = jax.random.randint(k2, (B,), 0, C, dtype=jnp.int32)

    out_mean = jax.block_until_ready(tce_loss(logits, labels, n=n,
                                              reduction="mean", block_b=16))
    ref_mean = _tce_ref(logits, labels, n=n, reduction="mean")
    assert jnp.allclose(out_mean, ref_mean, atol=1e-3, rtol=1e-3), (out_mean, ref_mean)

    out_none = jax.block_until_ready(tce_loss(logits, labels, n=n,
                                              reduction="none", block_b=16))
    ref_none = _tce_ref(logits, labels, n=n, reduction="none")
    assert jnp.allclose(out_none, ref_none, atol=1e-3, rtol=1e-3)

    # --- Test 2: n == 0 path (standard cross entropy), exact math ---
    out_ce = jax.block_until_ready(tce_loss(logits, labels, n=0,
                                            reduction="mean", block_b=16))
    ref_ce = _tce_ref(logits, labels, n=0, reduction="mean")
    assert jnp.allclose(out_ce, ref_ce, atol=1e-5, rtol=1e-5), (out_ce, ref_ce)

    # --- Test 3: bf16 logits on the wire (no wrapper-side upcast) ---
    logits_bf16 = jax.random.normal(k3, (B, C), dtype=jnp.float32).astype(jnp.bfloat16)
    out_bf16 = jax.block_until_ready(tce_loss(logits_bf16, labels, n=n,
                                              reduction="mean", block_b=16))
    ref_bf16 = _tce_ref(logits_bf16, labels, n=n, reduction="mean")
    assert jnp.allclose(out_bf16, ref_bf16, atol=2e-3, rtol=2e-3), (out_bf16, ref_bf16)

    # --- Test 4: batch not divisible by block_b (partial last block is masked) ---
    B2, n2 = 40, 3
    logits2 = jax.random.normal(k4, (B2, C), dtype=jnp.float32)
    labels2 = jax.random.randint(k2, (B2,), 0, C, dtype=jnp.int32)
    out2 = jax.block_until_ready(tce_loss(logits2, labels2, n=n2,
                                          reduction="none", block_b=16))
    ref2 = _tce_ref(logits2, labels2, n=n2, reduction="none")
    assert jnp.allclose(out2, ref2, atol=1e-3, rtol=1e-3)

    # --- Test 5: default block_b selection path (tiny batch) ---
    out_small = jax.block_until_ready(tce_loss(logits[:8], labels[:8], n=2,
                                               reduction="mean"))
    ref_small = _tce_ref(logits[:8], labels[:8], n=2, reduction="mean")
    assert jnp.allclose(out_small, ref_small, atol=1e-3, rtol=1e-3)

    print("KERNEL_OK")
</pallas_src>

<mosaic_0001>
module attributes {stable_mosaic.version = 11 : i64} {
  func.func @_tce_kernel(%arg0: i32, %arg1: memref<16x128xf32, #tpu.memory_space<vmem>>, %arg2: memref<16x1xi32, #tpu.memory_space<vmem>>, %arg3: memref<16x1xf32, #tpu.memory_space<vmem>>) attributes {dimension_semantics = [#tpu.dimension_semantics<parallel>], iteration_bounds = array<i64: 4>, scalar_prefetch = 0 : i64, scratch_operands = 0 : i64, tpu.core_type = #tpu.core_type<tc>, window_params = [{transform_indices = @transform_0, window_bounds = array<i64: 16, 128>}, {transform_indices = @transform_1, window_bounds = array<i64: 16, 1>}, {transform_indices = @transform_2, window_bounds = array<i64: 16, 1>}]} {
    %c0 = arith.constant 0 : index
    %c0_0 = arith.constant 0 : index
    %0 = vector.load %arg1[%c0, %c0_0] : memref<16x128xf32, #tpu.memory_space<vmem>>, vector<16x128xf32>
    %c0_1 = arith.constant 0 : index
    %c0_2 = arith.constant 0 : index
    %1 = vector.load %arg2[%c0_1, %c0_2] : memref<16x1xi32, #tpu.memory_space<vmem>>, vector<16x1xi32>
    %2 = tpu.iota {dimensions = array<i32: 1>} : vector<16x128xi32>
    %3 = vector.broadcast %1 : vector<16x1xi32> to vector<16x128xi32>
    %4 = arith.cmpi eq, %2, %3 : vector<16x128xi32>
    %cst = arith.constant dense<0xFF800000> : vector<16xf32>
    %5 = vector.multi_reduction <maximumf>, %0, %cst [1] : vector<16x128xf32> to vector<16xf32>
    %6 = vector.shape_cast %5 : vector<16xf32> to vector<16x1xf32>
    %7 = vector.broadcast %6 : vector<16x1xf32> to vector<16x128xf32>
    %8 = arith.subf %0, %7 : vector<16x128xf32>
    %9 = math.exp %8 : vector<16x128xf32>
    %cst_3 = arith.constant dense<0.000000e+00> : vector<16xf32>
    %10 = vector.multi_reduction <add>, %9, %cst_3 [1] : vector<16x128xf32> to vector<16xf32>
    %11 = vector.shape_cast %10 : vector<16xf32> to vector<16x1xf32>
    %cst_4 = arith.constant 0.000000e+00 : f32
    %12 = vector.broadcast %cst_4 : f32 to vector<16x128xf32>
    %13 = arith.select %4, %0, %12 : vector<16x128xi1>, vector<16x128xf32>
    %cst_5 = arith.constant dense<0.000000e+00> : vector<16xf32>
    %14 = vector.multi_reduction <add>, %13, %cst_5 [1] : vector<16x128xf32> to vector<16xf32>
    %15 = vector.shape_cast %14 : vector<16xf32> to vector<16x1xf32>
    %16 = arith.subf %15, %6 : vector<16x1xf32>
    %17 = math.exp %16 : vector<16x1xf32>
    %18 = tpu.reciprocal %11 {approx = true} : vector<16x1xf32> -> vector<16x1xf32>
    %19 = arith.mulf %17, %18 : vector<16x1xf32>
    %cst_6 = arith.constant 1.000000e+00 : f32
    %20 = vector.broadcast %cst_6 : f32 to vector<16x1xf32>
    %21 = arith.subf %20, %19 : vector<16x1xf32>
    %cst_7 = arith.constant 0.000000e+00 : f32
    %22 = vector.broadcast %cst_7 : f32 to vector<16x1xf32>
    %cst_8 = arith.constant 1.000000e+00 : f32
    %23 = vector.broadcast %cst_8 : f32 to vector<16x1xf32>
    %24 = arith.mulf %23, %21 : vector<16x1xf32>
    %cst_9 = arith.constant 1.000000e+00 : f32
    %25 = vector.broadcast %cst_9 : f32 to vector<16x1xf32>
    %26 = arith.mulf %24, %25 : vector<16x1xf32>
    %27 = arith.addf %22, %26 : vector<16x1xf32>
    %28 = arith.mulf %24, %21 : vector<16x1xf32>
    %cst_10 = arith.constant 5.000000e-01 : f32
    %29 = vector.broadcast %cst_10 : f32 to vector<16x1xf32>
    %30 = arith.mulf %28, %29 : vector<16x1xf32>
    %31 = arith.addf %27, %30 : vector<16x1xf32>
    %c0_11 = arith.constant 0 : index
    %c0_12 = arith.constant 0 : index
    %32 = vector.load %arg3[%c0_11, %c0_12] : memref<16x1xf32, #tpu.memory_space<vmem>>, vector<16x1xf32>
    tpu.vector_store %arg3[%c0_11, %c0_12], %31 {strides = array<i32>} : memref<16x1xf32, #tpu.memory_space<vmem>>, vector<16x1xf32>,
    return
  }
  func.func @transform_0(%arg0: i32) -> (i32, i32) {
    %c0_i32 = arith.constant 0 : i32
    %c0_i32_0 = arith.constant 0 : i32
    return %arg0, %c0_i32 : i32, i32
  }
  func.func @transform_1(%arg0: i32) -> (i32, i32) {
    %c0_i32 = arith.constant 0 : i32
    %c0_i32_0 = arith.constant 0 : i32
    return %arg0, %c0_i32 : i32, i32
  }
  func.func @transform_2(%arg0: i32) -> (i32, i32) {
    %c0_i32 = arith.constant 0 : i32
    %c0_i32_0 = arith.constant 0 : i32
    return %arg0, %c0_i32 : i32, i32
  }
}

</mosaic_0001>

<llo_original>
// kernel: tpu_custom_call.1
$region0: #{tpu_custom_call.1}
  #allocation0 [shape = 'u32[]', space=smem, size = 0x4, offset = 0x4, fixed_abs, tag = 'smem constant byte address 0x4 - core index']
  #allocation1 [shape = 'u32[144,128]{1,0:T(1,128)}', space=vmem, size = 0x12000, scoped, tag = 'internal scratch']
  %s0 = inlined_call_operand.hbm [shape: f32[64,128], index: 0, kind: input, shape index: {}]
  %s1 = inlined_call_operand.hbm [shape: s32[64,1], index: 1, kind: input, shape index: {}]
  %s2 = inlined_call_operand.hbm [shape: f32[64,1], index: 2, kind: output, shape index: {}]
  %s3 = sld [smem:[#allocation0]]
  $region49: #{tpu_custom_call.1} parent=0
    _
  %s5 = ssub.s32 1, %s3
  %s6 = scalar_select 0, %s5, %s3
  $region1: #{tpu_custom_call.1} parent=0
    #allocation2 [shape = 'u8[16384]{0}', space=vmem, size = 0x4000, scoped, tag = 'input window, operand 0']
    #allocation3 [shape = 's32[2]{0}', space=sflag, size = 0x8, scoped, tag = 'scoped memory for tpu_custom_call.1']
    #allocation4 [shape = 's32[2]{0}', space=sflag, size = 0x8, scoped, tag = 'scoped memory for tpu_custom_call.1']
    #allocation5 [shape = 'u8[16384]{0}', space=vmem, size = 0x4000, scoped, tag = 'input window, operand 1']
    #allocation6 [shape = 's32[2]{0}', space=sflag, size = 0x8, scoped, tag = 'scoped memory for tpu_custom_call.1']
    #allocation7 [shape = 'u8[16384]{0}', space=vmem, size = 0x4000, scoped, tag = 'output window, operand 0']
    %7 = vsyncpa [#allocation3], 0
    %s8 = scalar_lea.sflag [#allocation3], 1
    %9 = vsyncpa %s8, 0
    %10 = vsyncpa [#allocation6], 0
    %s11 = scalar_lea.sflag [#allocation6], 1
    %12 = vsyncpa %s11, 0
    %13 = vsyncpa [#allocation4], 0
    %s14 = scalar_lea.sflag [#allocation4], 1
    %15 = vsyncpa %s14, 0
    loop: start=0, step=1, limit=6
    $region2: #{tpu_custom_call.1} parent=1 // loop_pre_header
      _
    $region3: #{tpu_custom_call.1} parent=1 // loop_header
      %s17 = sphi 0, %s21
      %p18 = scmp.ge.s32.totalorder %s17, 6
      %s27 = sphi 0, %s29
      %s30 = sphi 0, %s27
      %s31 = sphi 0, %s30
      %s47 = sphi 0, %s31
      %s53 = sphi 0, %s55
      %s56 = sphi 0, %s53
      %s57 = sphi 0, %s56
      %s73 = sphi 0, %s57
      %s79 = sphi 0, %s81
      %s82 = sphi 0, %s79
      %s83 = sphi 0, %s82
      %s99 = sphi 0, %s83
    $region4: #{tpu_custom_call.1} parent=1 // loop_header_branch
      %20 = sbr.rel (%p18) target = $region8
    $region5: #{tpu_custom_call.1} parent=1 // loop_body
      %s22 = ssub.s32 %s17, 1
      %s23 = ssub.s32 %s17, 2
      %s24 = sadd.s32 %s17, 1
      %s25 = ssub.s32 %s17, %s24
      %p26 = scmp.eq.s32.totalorder %s25, 0
      %s28 = sadd.s32 %s27, 1
      %s29 = scalar_select %p26, %s27, %s28
      %p32 = pneg %p26
      %p33 = scmp.eq.s32.totalorder %s17, 3
      %p34 = por %p32, %p33
      %p35 = scmp.ne.s32.totalorder %s27, %s30
      %p36 = scmp.eq.s32.totalorder %s17, 0
      %p37 = por %p35, %p36
      %p38 = scmp.ne.s32.totalorder %s27, %s30
      %p39 = scmp.eq.s32.totalorder %s22, 3
      %p40 = por %p38, %p39
      %p41 = scmp.ne.s32.totalorder %s30, %s31
      %p42 = scmp.eq.s32.totalorder %s22, 0
      %p43 = por %p41, %p42
      %p44 = scmp.ne.s32.totalorder %s30, %s31
      %p45 = scmp.eq.s32.totalorder %s23, 3
      %p46 = por %p44, %p45
      %p48 = scmp.ne.s32.totalorder %s31, %s47
      %p49 = scmp.eq.s32.totalorder %s23, 0
      %p50 = por %p48, %p49
      %s51 = ssub.s32 %s17, %s24
      %p52 = scmp.eq.s32.totalorder %s51, 0
      %s54 = sadd.s32 %s53, 1
      %s55 = scalar_select %p52, %s53, %s54
      %p58 = pneg %p52
      %p59 = scmp.eq.s32.totalorder %s17, 3
      %p60 = por %p58, %p59
      %p61 = scmp.ne.s32.totalorder %s53, %s56
      %p62 = scmp.eq.s32.totalorder %s17, 0
      %p63 = por %p61, %p62
      %p64 = scmp.ne.s32.totalorder %s53, %s56
      %p65 = scmp.eq.s32.totalorder %s22, 3
      %p66 = por %p64, %p65
      %p67 = scmp.ne.s32.totalorder %s56, %s57
      %p68 = scmp.eq.s32.totalorder %s22, 0
      %p69 = por %p67, %p68
      %p70 = scmp.ne.s32.totalorder %s56, %s57
      %p71 = scmp.eq.s32.totalorder %s23, 3
      %p72 = por %p70, %p71
      %p74 = scmp.ne.s32.totalorder %s57, %s73
      %p75 = scmp.eq.s32.totalorder %s23, 0
      %p76 = por %p74, %p75
      %s77 = ssub.s32 %s17, %s24
      %p78 = scmp.eq.s32.totalorder %s77, 0
      %s80 = sadd.s32 %s79, 1
      %s81 = scalar_select %p78, %s79, %s80
      %p84 = pneg %p78
      %p85 = scmp.eq.s32.totalorder %s17, 3
      %p86 = por %p84, %p85
      %p87 = scmp.ne.s32.totalorder %s79, %s82
      %p88 = scmp.eq.s32.totalorder %s17, 0
      %p89 = por %p87, %p88
      %p90 = scmp.ne.s32.totalorder %s79, %s82
      %p91 = scmp.eq.s32.totalorder %s22, 3
      %p92 = por %p90, %p91
      %p93 = scmp.ne.s32.totalorder %s82, %s83
      %p94 = scmp.eq.s32.totalorder %s22, 0
      %p95 = por %p93, %p94
      %p96 = scmp.ne.s32.totalorder %s82, %s83
      %p97 = scmp.eq.s32.totalorder %s23, 3
      %p98 = por %p96, %p97
      %p100 = scmp.ne.s32.totalorder %s83, %s99
      %p101 = scmp.eq.s32.totalorder %s23, 0
      %p102 = por %p100, %p101
      %p103 = scmp.le.s32.totalorder 1, %s17
      %p104 = scmp.lt.s32.totalorder %s17, 5
      %p105 = pnand %p103, %p104
      %p106 = pneg %p105
      // Predicated region
      $region9: #{tpu_custom_call.1} parent=5 // pred_check
        _
      $region10: #{tpu_custom_call.1} parent=5 // pred_check_branch
        %108 = sbr.rel (%p105) target = $region12
      $region11: #{tpu_custom_call.1} parent=5 // pred_region
        %s109 = ssub.s32 %s17, 1
      $region12: #{tpu_custom_call.1} parent=5 // pred_fallthru
        _
      %p110 = scmp.lt.s32.totalorder %s17, 4
      // Predicated region
      $region13: #{tpu_custom_call.1} parent=5 // pred_check
        %p111 = pneg %p110
      $region14: #{tpu_custom_call.1} parent=5 // pred_check_branch
        %113 = sbr.rel (%p111) target = $region16
      $region15: #{tpu_custom_call.1} parent=5 // pred_region
        // Predicated region
        $region17: #{tpu_custom_call.1} parent=15 // pred_check
          %p114 = pneg %p37
        $region18: #{tpu_custom_call.1} parent=15 // pred_check_branch
          %116 = sbr.rel (%p114) target = $region20
        $region19: #{tpu_custom_call.1} parent=15 // pred_region
          %s117 = sand.u32 %s27, 1
          %s118 = scalar_lea.sflag [#allocation3], %s117
          %s119 = sand.u32 %s27, 1
          %s120 = smul.addr %s119, 16
          %s121 = scalar_lea.vmem [#allocation2], %s120
          %s122 = smul.u32 2, %s17
          %s124 = ssub.s32 256, 256
          %125 = vsyncadd %s118, %s124
          %s126 = smul.addr %s122, 128
          %s127 = scalar_lea.hbm %s0, %s126
          %s128 = sshll.u32 %s121, 4
          %s129 = int_to_ptr.vmem [resolvable:$true] %s128
          %134 = dma.hbm_to_vmem [thread:$0]  %s127, 256, %s129, %s118, 128, 128, 8
        $region20: #{tpu_custom_call.1} parent=15 // pred_fallthru
          _
        // Predicated region
        $region21: #{tpu_custom_call.1} parent=15 // pred_check
          %p135 = pneg %p63
        $region22: #{tpu_custom_call.1} parent=15 // pred_check_branch
          %137 = sbr.rel (%p135) target = $region24
        $region23: #{tpu_custom_call.1} parent=15 // pred_region
          %s138 = sand.u32 %s53, 1
          %s139 = scalar_lea.sflag [#allocation6], %s138
          %s140 = sand.u32 %s53, 1
          %s141 = smul.addr %s140, 16
          %s142 = scalar_lea.vmem [#allocation5], %s141
          %s143 = smul.u32 2, %s17
          %s145 = ssub.s32 256, 256
          %146 = vsyncadd %s139, %s145
          %s147 = smul.addr %s143, 128
          %s148 = scalar_lea.hbm %s1, %s147
          %s149 = sshll.u32 %s142, 4
          %s150 = int_to_ptr.vmem [resolvable:$true] %s149
          %155 = dma.hbm_to_vmem [thread:$0]  %s148, 256, %s150, %s139, 128, 128, 8
        $region24: #{tpu_custom_call.1} parent=15 // pred_fallthru
          _
      $region16: #{tpu_custom_call.1} parent=5 // pred_fallthru
        _
      %p156 = scmp.le.s32.totalorder 1, %s17
      %p157 = scmp.lt.s32.totalorder %s17, 5
      %p158 = pnand %p156, %p157
      %p159 = pneg %p158
      // Predicated region
      $region25: #{tpu_custom_call.1} parent=5 // pred_check
        _
      $region26: #{tpu_custom_call.1} parent=5 // pred_check_branch
        %161 = sbr.rel (%p158) target = $region28
      $region27: #{tpu_custom_call.1} parent=5 // pred_region
        %s162 = ssub.s32 %s17, 1
        %s163 = sand.u32 %s30, 1
        %s164 = scalar_lea.sflag [#allocation3], %s163
        %s165 = sand.u32 %s30, 1
        %s166 = smul.addr %s165, 16
        %s167 = scalar_lea.vmem [#allocation2], %s166
        // Predicated region
        $region29: #{tpu_custom_call.1} parent=27 // pred_check
          %p168 = pneg %p43
        $region30: #{tpu_custom_call.1} parent=27 // pred_check_branch
          %170 = sbr.rel (%p168) target = $region32
        $region31: #{tpu_custom_call.1} parent=27 // pred_region
          %171 = dma.done %s164, 256
        $region32: #{tpu_custom_call.1} parent=27 // pred_fallthru
          _
        %s172 = sand.u32 %s56, 1
        %s173 = scalar_lea.sflag [#allocation6], %s172
        %s174 = sand.u32 %s56, 1
        %s175 = smul.addr %s174, 16
        %s176 = scalar_lea.vmem [#allocation5], %s175
        // Predicated region
        $region33: #{tpu_custom_call.1} parent=27 // pred_check
          %p177 = pneg %p69
        $region34: #{tpu_custom_call.1} parent=27 // pred_check_branch
          %179 = sbr.rel (%p177) target = $region36
        $region35: #{tpu_custom_call.1} parent=27 // pred_region
          %180 = dma.done %s173, 256
        $region36: #{tpu_custom_call.1} parent=27 // pred_fallthru
          _
        %s181 = sand.u32 %s30, 1
        %s182 = scalar_lea.sflag [#allocation3], %s181
        %s183 = sand.u32 %s30, 1
        %s184 = smul.addr %s183, 16
        %s185 = scalar_lea.vmem [#allocation2], %s184
        %p186 = pneg %p43
        %p187 = pneg %p40
        %s188 = sand.u32 %s56, 1
        %s189 = scalar_lea.sflag [#allocation6], %s188
        %s190 = sand.u32 %s56, 1
        %s191 = smul.addr %s190, 16
        %s192 = scalar_lea.vmem [#allocation5], %s191
        %p193 = pneg %p69
        %p194 = pneg %p66
        %p195 = pneg %p95
        %p196 = pneg %p92
        %s197 = sand.u32 %s82, 1
        %s198 = scalar_lea.sflag [#allocation4], %s197
        %s199 = sand.u32 %s82, 1
        %s200 = smul.addr %s199, 16
        %s201 = scalar_lea.vmem [#allocation7], %s200
        %s202 = smul.u32 2, %s22
        %s203 = smul.u32 2, %s22
        %s204 = smul.u32 2, %s22
        %v205 = vld [vmem:[%s167] sm:$0xff]
        %v206 = vld [vmem:[%s167 + $0x8] sm:$0xff]
        %v207 = vld [vmem:[%s176] sm:$0xff]
        %v208 = vld [vmem:[%s176 + $0x8] sm:$0xff]
        %v209 = vlaneseq
        %v210 = vand.u32 %v209, 127
        %211 = vset.pattern.permute.xlu0 0
        %212 = vperm.xlu0 %211, %v207
        %v213 = vpop.permute.xlu0 %212
        %214 = vset.pattern.permute.xlu0 0
        %215 = vperm.xlu0 %214, %v208
        %v216 = vpop.permute.xlu0 %215
        %vm217 = vcmp.eq.s32.totalorder %v210, %v213
        %vm218 = vcmp.eq.s32.totalorder %v210, %v216
        %219 = vmax.xlane.f32.xlu0 %v205
        %v220 = vpop.xlane.xlu0 %219
        %221 = vmax.xlane.f32.xlu0 %v206
        %v222 = vpop.xlane.xlu0 %221
        %v223 = vsub.f32 %v205, %v220
        %v224 = vsub.f32 %v206, %v222
        %v225 = vmul.f32 %v223, 1.442695
        %v226 = vpow.pop %v225
        %v227 = vmul.f32 %v224, 1.442695
        %v228 = vpow.pop %v227
        %229 = vadd.xlane.f32.xlu0 %v226
        %v230 = vpop.xlane.xlu0 %229
        %231 = vadd.xlane.f32.xlu0 %v228
        %v232 = vpop.xlane.xlu0 %231
        %v233 = vsel %vm217, %v205, 0.0
        %v234 = vsel %vm218, %v206, 0.0
        %235 = vadd.xlane.f32.xlu0 %v233
        %v236 = vpop.xlane.xlu0 %235
        %237 = vadd.xlane.f32.xlu0 %v234
        %v238 = vpop.xlane.xlu0 %237
        %v239 = vsub.f32 %v236, %v220
        %v240 = vsub.f32 %v238, %v222
        %v241 = vmul.f32 %v239, 1.442695
        %v242 = vpow.pop %v241
        %v243 = vmul.f32 %v240, 1.442695
        %v244 = vpow.pop %v243
        %v245 = vrcp.pop %v230
        %v246 = vrcp.pop %v232
        %v247 = vmul.f32 %v242, %v245
        %v248 = vmul.f32 %v244, %v246
        %v249 = vsub.f32 1.0, %v247
        %v250 = vsub.f32 1.0, %v248
        %v251 = vadd.f32 %v249, 0.0
        %v252 = vadd.f32 %v250, 0.0
        %v253 = vmul.f32 %v249, %v249
        %v254 = vmul.f32 %v250, %v250
        %v255 = vmul.f32 %v253, 0.5
        %v256 = vmul.f32 %v254, 0.5
        %v257 = vadd.f32 %v251, %v255
        %v258 = vadd.f32 %v252, %v256
        %vm259 = vcmask 7168
        %260 = vst.msk [vmem:[%s201] sm:$0xff] %vm259, %v257
        %261 = vst.msk [vmem:[%s201 + $0x8] sm:$0xff] %vm259, %v258
        %s262 = sand.u32 %s82, 1
        %s263 = scalar_lea.sflag [#allocation4], %s262
        %s264 = sand.u32 %s82, 1
        %s265 = smul.addr %s264, 16
        %s266 = scalar_lea.vmem [#allocation7], %s265
        // Predicated region
        $region37: #{tpu_custom_call.1} parent=27 // pred_check
          %p267 = pneg %p92
        $region38: #{tpu_custom_call.1} parent=27 // pred_check_branch
          %269 = sbr.rel (%p267) target = $region40
        $region39: #{tpu_custom_call.1} parent=27 // pred_region
          %s270 = smul.u32 2, %s22
          %s272 = ssub.s32 256, 256
          %273 = vsyncadd %s263, %s272
          %s274 = smul.addr %s270, 128
          %s275 = scalar_lea.hbm %s2, %s274
          %s276 = sshll.u32 %s266, 4
          %s277 = int_to_ptr.vmem [resolvable:$true] %s276
          %282 = dma.vmem_to_hbm [thread:$0]  %s277, 256, %s275, %s263, 128, 128, 8
        $region40: #{tpu_custom_call.1} parent=27 // pred_fallthru
          _
      $region28: #{tpu_custom_call.1} parent=5 // pred_fallthru
        _
      %p283 = scmp.le.s32.totalorder 2, %s17
      // Predicated region
      $region41: #{tpu_custom_call.1} parent=5 // pred_check
        %p284 = pneg %p283
      $region42: #{tpu_custom_call.1} parent=5 // pred_check_branch
        %286 = sbr.rel (%p284) target = $region44
      $region43: #{tpu_custom_call.1} parent=5 // pred_region
        %s287 = ssub.s32 %s17, 2
        // Predicated region
        $region45: #{tpu_custom_call.1} parent=43 // pred_check
          %p288 = pneg %p98
        $region46: #{tpu_custom_call.1} parent=43 // pred_check_branch
          %290 = sbr.rel (%p288) target = $region48
        $region47: #{tpu_custom_call.1} parent=43 // pred_region
          %s291 = sand.u32 %s83, 1
          %s292 = scalar_lea.sflag [#allocation4], %s291
          %s293 = sand.u32 %s83, 1
          %s294 = smul.addr %s293, 16
          %s295 = scalar_lea.vmem [#allocation7], %s294
          %296 = dma.done %s292, 256
        $region48: #{tpu_custom_call.1} parent=43 // pred_fallthru
          _
      $region44: #{tpu_custom_call.1} parent=5 // pred_fallthru
        _
    $region6: #{tpu_custom_call.1} parent=1 // loop_footer
      %s21 = sadd.s32 1, %s17
    $region7: #{tpu_custom_call.1} parent=1 // loop_footer_branch
      %16 = sbr.rel target = $region3
    $region8: #{tpu_custom_call.1} parent=1 // loop_exit
      _
    %297 = vsyncpa [#allocation3], 1
    %s298 = scalar_lea.sflag [#allocation3], 1
    %299 = vsyncpa %s298, 1
    %300 = vsyncpa [#allocation6], 1
    %s301 = scalar_lea.sflag [#allocation6], 1
    %302 = vsyncpa %s301, 1
    %303 = vsyncpa [#allocation4], 1
    %s304 = scalar_lea.sflag [#allocation4], 1
    %305 = vsyncpa %s304, 1

</llo_original>
